<compile_context>
chip_gen: v7x
topology: tpu7x:2x2x1
jax: 0.10.0
libtpu: 0.0.40
codegen_flags: <defaults>
</compile_context>

<pallas_src>
import functools

import jax
import jax.numpy as jnp
from jax.experimental import pallas as pl
from jax.experimental.pallas import tpu as pltpu


# ----------------------------------------------------------------------------- fused kernel

def _make_fused_kernel(num_layers, has_features):
    """Build the fused (3-NN interp + concat + MLP chain) kernel for a fixed layer count."""

    def kernel(*refs):
        out_ref = refs[-1]
        it = iter(refs[:-1])

        xyz_t_ref = next(it)                        # (1, 3,  Nt)   query coords, transposed
        xyzp_ref = next(it)                         # (1, M,  3)    source coords
        featp_ref = next(it)                        # (1, Cp, M)    source features
        feat_ref = next(it) if has_features else None  # (1, C, Nt)  current-layer features

        layer_refs = []
        for li in range(num_layers):
            if li == 0:
                wa = next(it)                       # (Cout1, Cp)  bf16, BN-folded
                wb = next(it) if has_features else None  # (Cout1, C)
                sh = next(it)                       # (Cout1, 1)   f32
                layer_refs.append((wa, wb, sh))
            else:
                w = next(it)                        # (Cout, Cin)  bf16, BN-folded
                sh = next(it)                       # (Cout, 1)    f32
                layer_refs.append((w, None, sh))

        xyz_t = xyz_t_ref[0]                        # (3, Nt)  f32
        xyzp = xyzp_ref[0]                          # (M, 3)   f32
        featp = featp_ref[0]                        # (Cp, M)  f32
        m = xyzp.shape[0]
        nt = xyz_t.shape[1]

        # ---- pairwise squared distances via |p|^2 + |x|^2 - 2 p.x (MXU) -------------------
        x_sq = jnp.sum(xyz_t * xyz_t, axis=0, keepdims=True)          # (1, Nt)
        p_sq = jnp.sum(xyzp * xyzp, axis=1, keepdims=True)            # (M, 1)
        cross = jnp.dot(xyzp, xyz_t, preferred_element_type=jnp.float32)  # (M, Nt)  f32 MXU
        d2 = jnp.maximum(p_sq + x_sq - 2.0 * cross, 0.0)              # clamp rounding negatives

        # ---- 3 nearest neighbours (min over sublane axis, smallest-index tie break) -------
        m_iota = jax.lax.broadcasted_iota(jnp.int32, (m, nt), 0)
        work = d2
        wmat = jnp.zeros((m, nt), jnp.float32)      # dense interpolation weights (M, Nt)
        inv_sum = jnp.zeros((1, nt), jnp.float32)
        for _ in range(3):
            dmin2 = jnp.min(work, axis=0, keepdims=True)                          # (1, Nt)
            idx = jnp.min(jnp.where(work == dmin2, m_iota, m), axis=0, keepdims=True)
            sel = m_iota == idx                                                    # one-hot
            w = 1.0 / (jnp.sqrt(dmin2) + 1e-8)      # sqrt only on the minima (3*Nt EUP ops)
            wmat = wmat + jnp.where(sel, w, 0.0)
            inv_sum = inv_sum + w
            work = jnp.where(sel, jnp.float32(3.0e38), work)

        # ---- interpolate: (Cp, M) @ (M, Nt) on the MXU (bf16 in, f32 acc) ------------------
        interp = jnp.dot(featp.astype(jnp.bfloat16), wmat.astype(jnp.bfloat16),
                         preferred_element_type=jnp.float32)           # (Cp, Nt)
        interp = interp * pl.reciprocal(inv_sum, approx=True)          # normalize after matmul

        # ---- fused MLP chain: Conv1d(k=1) + BN(eval) + ReLU per layer ----------------------
        h = interp
        for li, (wa_ref, wb_ref, sh_ref) in enumerate(layer_refs):
            y = jnp.dot(wa_ref[...], h.astype(jnp.bfloat16),
                        preferred_element_type=jnp.float32)            # (Cout, Nt)
            if li == 0 and wb_ref is not None:
                # fused channel-concat: W1 split into [W1_interp | W1_feat]
                y = y + jnp.dot(wb_ref[...], feat_ref[0].astype(jnp.bfloat16),
                                preferred_element_type=jnp.float32)
            y = y + sh_ref[...]                                        # folded bias + BN
            h = jnp.maximum(y, 0.0)

        out_ref[0] = h.astype(out_ref.dtype)                           # lane-dense store

    return kernel


# ----------------------------------------------------------------------------- wrapper

def _pick_tile_n(n, m):
    """Largest lane-aligned query tile keeping the (M, TILE_N) intermediates under ~24 MiB."""
    if n % 128 != 0:
        return n                                   # small / odd N: one full-width tile
    budget = 24 * 1024 * 1024
    per_col = max(m, 8) * 4 * 6                    # ~6 live f32 (M, tile) arrays
    cap = max(128, (budget // per_col) // 128 * 128)
    for cand in (512, 384, 256, 128):
        if cand <= cap and n % cand == 0:
            return cand
    return 128


def feature_propagator_forward(xyz, xyz_prev, features, features_prev, params):
    """JAX/Pallas equivalent of PointNet2FeaturePropagator.forward.

    xyz           : (B, N, 3)
    xyz_prev      : (B, M, 3)
    features      : (B, C, N)   or None
    features_prev : (B, Cp, M)
    params        : list of (w (Cout,Cin), bias, gamma, beta, running_mean, running_var)
    returns       : (B, Cout_last, N)
    """
    b_sz, n, _ = xyz.shape
    m = xyz_prev.shape[1]
    cp = features_prev.shape[1]
    has_features = features is not None
    c = features.shape[1] if has_features else 0

    tile_n = _pick_tile_n(n, m)
    n_tiles = n // tile_n

    xyz_t = jnp.transpose(xyz, (0, 2, 1))          # (B, 3, N) -- only transpose in the wrapper

    # Fold conv bias + eval-mode BatchNorm into a single affine; cast weights to bf16.
    eps = 1e-5  # PyTorch BatchNorm1d default
    folded = []
    for (w, bias, gamma, beta, rmean, rvar) in params:
        scale = gamma / jnp.sqrt(rvar + eps)                       # (Cout,)
        w_f = (w * scale[:, None]).astype(jnp.bfloat16)            # (Cout, Cin)
        shift = (beta + (bias - rmean) * scale).reshape(-1, 1).astype(jnp.float32)
        folded.append((w_f, shift))

    inputs = [xyz_t, xyz_prev, features_prev]
    in_specs = [
        pl.BlockSpec((1, 3, tile_n), lambda bb, tt: (bb, 0, tt)),
        pl.BlockSpec((1, m, 3), lambda bb, tt: (bb, 0, 0)),
        pl.BlockSpec((1, cp, m), lambda bb, tt: (bb, 0, 0)),
    ]
    if has_features:
        inputs.append(features)
        in_specs.append(pl.BlockSpec((1, c, tile_n), lambda bb, tt: (bb, 0, tt)))

    for li, (w_f, shift) in enumerate(folded):
        if li == 0 and has_features:
            parts = [w_f[:, :cp], w_f[:, cp:], shift]              # split W1 for fused concat
        else:
            parts = [w_f, shift]
        for p in parts:
            inputs.append(p)
            in_specs.append(pl.BlockSpec(p.shape, lambda bb, tt: (0, 0)))

    cout_last = params[-1][0].shape[0]
    out = pl.pallas_call(
        _make_fused_kernel(len(params), has_features),
        out_shape=jax.ShapeDtypeStruct((b_sz, cout_last, n), jnp.float32),
        grid=(b_sz, n_tiles),
        in_specs=in_specs,
        out_specs=pl.BlockSpec((1, cout_last, tile_n), lambda bb, tt: (bb, 0, tt)),
        compiler_params=pltpu.CompilerParams(
            dimension_semantics=("parallel", "parallel"),
            vmem_limit_bytes=64 * 1024 * 1024,
        ),
    )(*inputs)
    return out                                      # already (B, Cout_last, N)


# ----------------------------------------------------------------------------- pure-JAX reference

def reference_forward(xyz, xyz_prev, features, features_prev, params):
    d2 = jnp.sum((xyz[:, :, None, :] - xyz_prev[:, None, :, :]) ** 2, axis=-1)   # (B,N,M)
    dist = jnp.sqrt(d2)
    idx = jnp.argsort(dist, axis=-1)[..., :3]                                     # (B,N,3)
    knn_d = jnp.take_along_axis(dist, idx, axis=-1)
    inv = 1.0 / (knn_d + 1e-8)
    w = inv / jnp.sum(inv, axis=-1, keepdims=True)                                # (B,N,3)

    fp = jnp.transpose(features_prev, (0, 2, 1))                                  # (B,M,Cp)
    gathered = jnp.take_along_axis(fp[:, None, :, :], idx[..., None], axis=2)     # (B,N,3,Cp)
    interp = jnp.sum(w[..., None] * gathered, axis=2)                             # (B,N,Cp)

    x = interp
    if features is not None:
        x = jnp.concatenate([interp, jnp.transpose(features, (0, 2, 1))], axis=-1)

    eps = 1e-5
    for (wt_, b, gamma, beta, rmean, rvar) in params:
        y = jnp.einsum("bnc,oc->bno", x, wt_) + b
        y = (y - rmean) / jnp.sqrt(rvar + eps) * gamma + beta
        x = jnp.maximum(y, 0.0)
    return jnp.transpose(x, (0, 2, 1))


# ----------------------------------------------------------------------------- params / main

def make_params(layer_dims, in_features, key):
    params = []
    cin = in_features
    for i, cout in enumerate(layer_dims):
        k = jax.random.fold_in(key, i)
        kw, kb, kg, kbe, km, kv = jax.random.split(k, 6)
        w = jax.random.normal(kw, (cout, cin), jnp.float32) / jnp.sqrt(jnp.float32(cin))
        b = 0.1 * jax.random.normal(kb, (cout,), jnp.float32)
        gamma = 1.0 + 0.1 * jax.random.normal(kg, (cout,), jnp.float32)
        beta = 0.1 * jax.random.normal(kbe, (cout,), jnp.float32)
        rmean = 0.1 * jax.random.normal(km, (cout,), jnp.float32)
        rvar = 1.0 + 0.1 * jax.random.uniform(kv, (cout,), jnp.float32)
        params.append((w, b, gamma, beta, rmean, rvar))
        cin = cout
    return params


if __name__ == "__main__":
    B, N, M = 2, 16, 8          # batch, num_points (current), num_points_prev
    C, Cp = 4, 6                # num_features, num_features_prev
    layer_dims = [32, 16]

    key = jax.random.PRNGKey(0)
    k1, k2, k3, k4, kp = jax.random.split(key, 5)
    xyz = jax.random.normal(k1, (B, N, 3), jnp.float32)
    xyz_prev = jax.random.normal(k2, (B, M, 3), jnp.float32)
    features = jax.random.normal(k3, (B, C, N), jnp.float32)
    features_prev = jax.random.normal(k4, (B, Cp, M), jnp.float32)

    params = make_params(layer_dims, C + Cp, kp)

    fwd = jax.jit(functools.partial(feature_propagator_forward, params=params))
    out = fwd(xyz, xyz_prev, features, features_prev)
    jax.block_until_ready(out)

    ref = reference_forward(xyz, xyz_prev, features, features_prev, params)
    assert out.shape == (B, layer_dims[-1], N), out.shape
    # bf16 MXU operands -> slightly looser tolerance vs the pure-f32 reference
    assert jnp.allclose(out, ref, atol=5e-2, rtol=5e-2), (
        float(jnp.max(jnp.abs(out - ref))))

    print("KERNEL_OK")
</pallas_src>

<mosaic_0001>
module attributes {stable_mosaic.version = 11 : i64} {
  func.func @kernel(%arg0: i32, %arg1: i32, %arg2: memref<1x3x16xf32, #tpu.memory_space<vmem>>, %arg3: memref<1x8x3xf32, #tpu.memory_space<vmem>>, %arg4: memref<1x6x8xf32, #tpu.memory_space<vmem>>, %arg5: memref<1x4x16xf32, #tpu.memory_space<vmem>>, %arg6: memref<32x6xbf16, #tpu.memory_space<vmem>>, %arg7: memref<32x4xbf16, #tpu.memory_space<vmem>>, %arg8: memref<32x1xf32, #tpu.memory_space<vmem>>, %arg9: memref<16x32xbf16, #tpu.memory_space<vmem>>, %arg10: memref<16x1xf32, #tpu.memory_space<vmem>>, %arg11: memref<1x16x16xf32, #tpu.memory_space<vmem>>) attributes {dimension_semantics = [#tpu.dimension_semantics<parallel>, #tpu.dimension_semantics<parallel>], iteration_bounds = array<i64: 2, 1>, scalar_prefetch = 0 : i64, scratch_operands = 0 : i64, tpu.core_type = #tpu.core_type<tc>, window_params = [{transform_indices = @transform_0, window_bounds = array<i64: 1, 3, 16>}, {transform_indices = @transform_1, window_bounds = array<i64: 1, 8, 3>}, {transform_indices = @transform_2, window_bounds = array<i64: 1, 6, 8>}, {transform_indices = @transform_3, window_bounds = array<i64: 1, 4, 16>}, {pipeline_mode = #tpu.pipeline_mode<synchronous>, transform_indices = @transform_4, window_bounds = array<i64: 32, 6>}, {pipeline_mode = #tpu.pipeline_mode<synchronous>, transform_indices = @transform_5, window_bounds = array<i64: 32, 4>}, {pipeline_mode = #tpu.pipeline_mode<synchronous>, transform_indices = @transform_6, window_bounds = array<i64: 32, 1>}, {pipeline_mode = #tpu.pipeline_mode<synchronous>, transform_indices = @transform_7, window_bounds = array<i64: 16, 32>}, {pipeline_mode = #tpu.pipeline_mode<synchronous>, transform_indices = @transform_8, window_bounds = array<i64: 16, 1>}, {transform_indices = @transform_9, window_bounds = array<i64: 1, 16, 16>}]} {
    %c0 = arith.constant 0 : index
    %c0_0 = arith.constant 0 : index
    %c0_1 = arith.constant 0 : index
    %0 = vector.load %arg2[%c0, %c0_0, %c0_1] : memref<1x3x16xf32, #tpu.memory_space<vmem>>, vector<1x3x16xf32>
    %1 = vector.shape_cast %0 : vector<1x3x16xf32> to vector<3x16xf32>
    %c0_2 = arith.constant 0 : index
    %c0_3 = arith.constant 0 : index
    %c0_4 = arith.constant 0 : index
    %2 = vector.load %arg3[%c0_2, %c0_3, %c0_4] : memref<1x8x3xf32, #tpu.memory_space<vmem>>, vector<1x8x3xf32>
    %3 = vector.shape_cast %2 : vector<1x8x3xf32> to vector<8x3xf32>
    %c0_5 = arith.constant 0 : index
    %c0_6 = arith.constant 0 : index
    %c0_7 = arith.constant 0 : index
    %4 = vector.load %arg4[%c0_5, %c0_6, %c0_7] : memref<1x6x8xf32, #tpu.memory_space<vmem>>, vector<1x6x8xf32>
    %5 = vector.shape_cast %4 : vector<1x6x8xf32> to vector<6x8xf32>
    %6 = arith.mulf %1, %1 : vector<3x16xf32>
    %cst = arith.constant dense<0.000000e+00> : vector<16xf32>
    %7 = vector.multi_reduction <add>, %6, %cst [0] : vector<3x16xf32> to vector<16xf32>
    %8 = vector.shape_cast %7 : vector<16xf32> to vector<1x16xf32>
    %9 = arith.mulf %3, %3 : vector<8x3xf32>
    %cst_8 = arith.constant dense<0.000000e+00> : vector<8xf32>
    %10 = vector.multi_reduction <add>, %9, %cst_8 [1] : vector<8x3xf32> to vector<8xf32>
    %11 = vector.shape_cast %10 : vector<8xf32> to vector<8x1xf32>
    %cst_9 = arith.constant dense<0.000000e+00> : vector<8x16xf32>
    %12 = tpu.matmul %3, %1, %cst_9 {dimension_numbers = #tpu.dot_dimension_numbers<[1], [0], [0], [1], [0, 0, 1, 1], [], []>} : vector<8x3xf32>, vector<3x16xf32>, vector<8x16xf32> -> vector<8x16xf32>
    %13 = vector.broadcast %11 : vector<8x1xf32> to vector<8x16xf32>
    %14 = vector.broadcast %8 : vector<1x16xf32> to vector<8x16xf32>
    %15 = arith.addf %13, %14 : vector<8x16xf32>
    %cst_10 = arith.constant 2.000000e+00 : f32
    %16 = vector.broadcast %cst_10 : f32 to vector<8x16xf32>
    %17 = arith.mulf %16, %12 : vector<8x16xf32>
    %18 = arith.subf %15, %17 : vector<8x16xf32>
    %cst_11 = arith.constant 0.000000e+00 : f32
    %19 = vector.broadcast %cst_11 : f32 to vector<8x16xf32>
    %20 = arith.maximumf %18, %19 : vector<8x16xf32>
    %21 = tpu.iota {dimensions = array<i32: 0>} : vector<8x16xi32>
    %cst_12 = arith.constant 0.000000e+00 : f32
    %22 = vector.broadcast %cst_12 : f32 to vector<8x16xf32>
    %cst_13 = arith.constant 0.000000e+00 : f32
    %23 = vector.broadcast %cst_13 : f32 to vector<1x16xf32>
    %cst_14 = arith.constant dense<0x7F800000> : vector<16xf32>
    %24 = vector.multi_reduction <minimumf>, %20, %cst_14 [0] : vector<8x16xf32> to vector<16xf32>
    %25 = vector.shape_cast %24 : vector<16xf32> to vector<1x16xf32>
    %26 = vector.broadcast %25 : vector<1x16xf32> to vector<8x16xf32>
    %27 = arith.cmpf oeq, %20, %26 : vector<8x16xf32>
    %c8_i32 = arith.constant 8 : i32
    %28 = vector.broadcast %c8_i32 : i32 to vector<8x16xi32>
    %29 = arith.select %27, %21, %28 : vector<8x16xi1>, vector<8x16xi32>
    %cst_15 = arith.constant dense<2147483647> : vector<16xi32>
    %30 = vector.multi_reduction <minsi>, %29, %cst_15 [0] : vector<8x16xi32> to vector<16xi32>
    %31 = vector.shape_cast %30 : vector<16xi32> to vector<1x16xi32>
    %32 = vector.broadcast %31 : vector<1x16xi32> to vector<8x16xi32>
    %33 = arith.cmpi eq, %21, %32 : vector<8x16xi32>
    %34 = math.sqrt %25 : vector<1x16xf32>
    %cst_16 = arith.constant 9.99999993E-9 : f32
    %35 = vector.broadcast %cst_16 : f32 to vector<1x16xf32>
    %36 = arith.addf %34, %35 : vector<1x16xf32>
    %cst_17 = arith.constant 1.000000e+00 : f32
    %37 = vector.broadcast %cst_17 : f32 to vector<1x16xf32>
    %38 = arith.divf %37, %36 : vector<1x16xf32>
    %cst_18 = arith.constant 0.000000e+00 : f32
    %39 = vector.shape_cast %38 : vector<1x16xf32> to vector<1x16xf32>
    %40 = vector.broadcast %39 : vector<1x16xf32> to vector<8x16xf32>
    %41 = vector.broadcast %cst_18 : f32 to vector<8x16xf32>
    %42 = arith.select %33, %40, %41 : vector<8x16xi1>, vector<8x16xf32>
    %43 = arith.addf %22, %42 : vector<8x16xf32>
    %44 = arith.addf %23, %38 : vector<1x16xf32>
    %cst_19 = arith.constant 3.000000e+38 : f32
    %45 = vector.broadcast %cst_19 : f32 to vector<8x16xf32>
    %46 = arith.select %33, %45, %20 : vector<8x16xi1>, vector<8x16xf32>
    %cst_20 = arith.constant dense<0x7F800000> : vector<16xf32>
    %47 = vector.multi_reduction <minimumf>, %46, %cst_20 [0] : vector<8x16xf32> to vector<16xf32>
    %48 = vector.shape_cast %47 : vector<16xf32> to vector<1x16xf32>
    %49 = vector.broadcast %48 : vector<1x16xf32> to vector<8x16xf32>
    %50 = arith.cmpf oeq, %46, %49 : vector<8x16xf32>
    %c8_i32_21 = arith.constant 8 : i32
    %51 = vector.broadcast %c8_i32_21 : i32 to vector<8x16xi32>
    %52 = arith.select %50, %21, %51 : vector<8x16xi1>, vector<8x16xi32>
    %cst_22 = arith.constant dense<2147483647> : vector<16xi32>
    %53 = vector.multi_reduction <minsi>, %52, %cst_22 [0] : vector<8x16xi32> to vector<16xi32>
    %54 = vector.shape_cast %53 : vector<16xi32> to vector<1x16xi32>
    %55 = vector.broadcast %54 : vector<1x16xi32> to vector<8x16xi32>
    %56 = arith.cmpi eq, %21, %55 : vector<8x16xi32>
    %57 = math.sqrt %48 : vector<1x16xf32>
    %cst_23 = arith.constant 9.99999993E-9 : f32
    %58 = vector.broadcast %cst_23 : f32 to vector<1x16xf32>
    %59 = arith.addf %57, %58 : vector<1x16xf32>
    %cst_24 = arith.constant 1.000000e+00 : f32
    %60 = vector.broadcast %cst_24 : f32 to vector<1x16xf32>
    %61 = arith.divf %60, %59 : vector<1x16xf32>
    %cst_25 = arith.constant 0.000000e+00 : f32
    %62 = vector.shape_cast %61 : vector<1x16xf32> to vector<1x16xf32>
    %63 = vector.broadcast %62 : vector<1x16xf32> to vector<8x16xf32>
    %64 = vector.broadcast %cst_25 : f32 to vector<8x16xf32>
    %65 = arith.select %56, %63, %64 : vector<8x16xi1>, vector<8x16xf32>
    %66 = arith.addf %43, %65 : vector<8x16xf32>
    %67 = arith.addf %44, %61 : vector<1x16xf32>
    %cst_26 = arith.constant 3.000000e+38 : f32
    %68 = vector.broadcast %cst_26 : f32 to vector<8x16xf32>
    %69 = arith.select %56, %68, %46 : vector<8x16xi1>, vector<8x16xf32>
    %cst_27 = arith.constant dense<0x7F800000> : vector<16xf32>
    %70 = vector.multi_reduction <minimumf>, %69, %cst_27 [0] : vector<8x16xf32> to vector<16xf32>
    %71 = vector.shape_cast %70 : vector<16xf32> to vector<1x16xf32>
    %72 = vector.broadcast %71 : vector<1x16xf32> to vector<8x16xf32>
    %73 = arith.cmpf oeq, %69, %72 : vector<8x16xf32>
    %c8_i32_28 = arith.constant 8 : i32
    %74 = vector.broadcast %c8_i32_28 : i32 to vector<8x16xi32>
    %75 = arith.select %73, %21, %74 : vector<8x16xi1>, vector<8x16xi32>
    %cst_29 = arith.constant dense<2147483647> : vector<16xi32>
    %76 = vector.multi_reduction <minsi>, %75, %cst_29 [0] : vector<8x16xi32> to vector<16xi32>
    %77 = vector.shape_cast %76 : vector<16xi32> to vector<1x16xi32>
    %78 = vector.broadcast %77 : vector<1x16xi32> to vector<8x16xi32>
    %79 = arith.cmpi eq, %21, %78 : vector<8x16xi32>
    %80 = math.sqrt %71 : vector<1x16xf32>
    %cst_30 = arith.constant 9.99999993E-9 : f32
    %81 = vector.broadcast %cst_30 : f32 to vector<1x16xf32>
    %82 = arith.addf %80, %81 : vector<1x16xf32>
    %cst_31 = arith.constant 1.000000e+00 : f32
    %83 = vector.broadcast %cst_31 : f32 to vector<1x16xf32>
    %84 = arith.divf %83, %82 : vector<1x16xf32>
    %cst_32 = arith.constant 0.000000e+00 : f32
    %85 = vector.shape_cast %84 : vector<1x16xf32> to vector<1x16xf32>
    %86 = vector.broadcast %85 : vector<1x16xf32> to vector<8x16xf32>
    %87 = vector.broadcast %cst_32 : f32 to vector<8x16xf32>
    %88 = arith.select %79, %86, %87 : vector<8x16xi1>, vector<8x16xf32>
    %89 = arith.addf %66, %88 : vector<8x16xf32>
    %90 = arith.addf %67, %84 : vector<1x16xf32>
    %91 = arith.truncf %5 : vector<6x8xf32> to vector<6x8xbf16>
    %92 = arith.truncf %89 : vector<8x16xf32> to vector<8x16xbf16>
    %cst_33 = arith.constant dense<0.000000e+00> : vector<6x16xf32>
    %93 = tpu.matmul %91, %92, %cst_33 {dimension_numbers = #tpu.dot_dimension_numbers<[1], [0], [0], [1], [0, 0, 1, 1], [], []>} : vector<6x8xbf16>, vector<8x16xbf16>, vector<6x16xf32> -> vector<6x16xf32>
    %94 = tpu.reciprocal %90 {approx = true} : vector<1x16xf32> -> vector<1x16xf32>
    %95 = vector.broadcast %94 : vector<1x16xf32> to vector<6x16xf32>
    %96 = arith.mulf %93, %95 : vector<6x16xf32>
    %c0_34 = arith.constant 0 : index
    %c0_35 = arith.constant 0 : index
    %97 = vector.load %arg6[%c0_34, %c0_35] : memref<32x6xbf16, #tpu.memory_space<vmem>>, vector<32x6xbf16>
    %98 = arith.truncf %96 : vector<6x16xf32> to vector<6x16xbf16>
    %cst_36 = arith.constant dense<0.000000e+00> : vector<32x16xf32>
    %99 = tpu.matmul %97, %98, %cst_36 {dimension_numbers = #tpu.dot_dimension_numbers<[1], [0], [0], [1], [0, 0, 1, 1], [], []>} : vector<32x6xbf16>, vector<6x16xbf16>, vector<32x16xf32> -> vector<32x16xf32>
    %c0_37 = arith.constant 0 : index
    %c0_38 = arith.constant 0 : index
    %100 = vector.load %arg7[%c0_37, %c0_38] : memref<32x4xbf16, #tpu.memory_space<vmem>>, vector<32x4xbf16>
    %c0_39 = arith.constant 0 : index
    %c0_40 = arith.constant 0 : index
    %c0_41 = arith.constant 0 : index
    %101 = vector.load %arg5[%c0_39, %c0_40, %c0_41] : memref<1x4x16xf32, #tpu.memory_space<vmem>>, vector<1x4x16xf32>
    %102 = vector.shape_cast %101 : vector<1x4x16xf32> to vector<4x16xf32>
    %103 = arith.truncf %102 : vector<4x16xf32> to vector<4x16xbf16>
    %cst_42 = arith.constant dense<0.000000e+00> : vector<32x16xf32>
    %104 = tpu.matmul %100, %103, %cst_42 {dimension_numbers = #tpu.dot_dimension_numbers<[1], [0], [0], [1], [0, 0, 1, 1], [], []>} : vector<32x4xbf16>, vector<4x16xbf16>, vector<32x16xf32> -> vector<32x16xf32>
    %105 = arith.addf %99, %104 : vector<32x16xf32>
    %c0_43 = arith.constant 0 : index
    %c0_44 = arith.constant 0 : index
    %106 = vector.load %arg8[%c0_43, %c0_44] : memref<32x1xf32, #tpu.memory_space<vmem>>, vector<32x1xf32>
    %107 = vector.broadcast %106 : vector<32x1xf32> to vector<32x16xf32>
    %108 = arith.addf %105, %107 : vector<32x16xf32>
    %cst_45 = arith.constant 0.000000e+00 : f32
    %109 = vector.broadcast %cst_45 : f32 to vector<32x16xf32>
    %110 = arith.maximumf %108, %109 : vector<32x16xf32>
    %c0_46 = arith.constant 0 : index
    %c0_47 = arith.constant 0 : index
    %111 = vector.load %arg9[%c0_46, %c0_47] : memref<16x32xbf16, #tpu.memory_space<vmem>>, vector<16x32xbf16>
    %112 = arith.truncf %110 : vector<32x16xf32> to vector<32x16xbf16>
    %cst_48 = arith.constant dense<0.000000e+00> : vector<16x16xf32>
    %113 = tpu.matmul %111, %112, %cst_48 {dimension_numbers = #tpu.dot_dimension_numbers<[1], [0], [0], [1], [0, 0, 1, 1], [], []>} : vector<16x32xbf16>, vector<32x16xbf16>, vector<16x16xf32> -> vector<16x16xf32>
    %c0_49 = arith.constant 0 : index
    %c0_50 = arith.constant 0 : index
    %114 = vector.load %arg10[%c0_49, %c0_50] : memref<16x1xf32, #tpu.memory_space<vmem>>, vector<16x1xf32>
    %115 = vector.broadcast %114 : vector<16x1xf32> to vector<16x16xf32>
    %116 = arith.addf %113, %115 : vector<16x16xf32>
    %cst_51 = arith.constant 0.000000e+00 : f32
    %117 = vector.broadcast %cst_51 : f32 to vector<16x16xf32>
    %118 = arith.maximumf %116, %117 : vector<16x16xf32>
    %c0_52 = arith.constant 0 : index
    %c0_53 = arith.constant 0 : index
    %c0_54 = arith.constant 0 : index
    %119 = vector.load %arg11[%c0_52, %c0_53, %c0_54] : memref<1x16x16xf32, #tpu.memory_space<vmem>>, vector<1x16x16xf32>
    %120 = vector.shape_cast %119 : vector<1x16x16xf32> to vector<16x16xf32>
    %121 = vector.shape_cast %118 : vector<16x16xf32> to vector<1x16x16xf32>
    tpu.vector_store %arg11[%c0_52, %c0_53, %c0_54], %121 {strides = array<i32>} : memref<1x16x16xf32, #tpu.memory_space<vmem>>, vector<1x16x16xf32>,
    return
  }
  func.func @transform_0(%arg0: i32, %arg1: i32) -> (i32, i32, i32) {
    %c0_i32 = arith.constant 0 : i32
    %c0_i32_0 = arith.constant 0 : i32
    return %arg0, %c0_i32, %arg1 : i32, i32, i32
  }
  func.func @transform_1(%arg0: i32, %arg1: i32) -> (i32, i32, i32) {
    %c0_i32 = arith.constant 0 : i32
    %c0_i32_0 = arith.constant 0 : i32
    %c0_i32_1 = arith.constant 0 : i32
    return %arg0, %c0_i32, %c0_i32_0 : i32, i32, i32
  }
  func.func @transform_2(%arg0: i32, %arg1: i32) -> (i32, i32, i32) {
    %c0_i32 = arith.constant 0 : i32
    %c0_i32_0 = arith.constant 0 : i32
    %c0_i32_1 = arith.constant 0 : i32
    return %arg0, %c0_i32, %c0_i32_0 : i32, i32, i32
  }
  func.func @transform_3(%arg0: i32, %arg1: i32) -> (i32, i32, i32) {
    %c0_i32 = arith.constant 0 : i32
    %c0_i32_0 = arith.constant 0 : i32
    return %arg0, %c0_i32, %arg1 : i32, i32, i32
  }
  func.func @transform_4(%arg0: i32, %arg1: i32) -> (i32, i32) {
    %c0_i32 = arith.constant 0 : i32
    %c0_i32_0 = arith.constant 0 : i32
    %c0_i32_1 = arith.constant 0 : i32
    return %c0_i32, %c0_i32_0 : i32, i32
  }
  func.func @transform_5(%arg0: i32, %arg1: i32) -> (i32, i32) {
    %c0_i32 = arith.constant 0 : i32
    %c0_i32_0 = arith.constant 0 : i32
    %c0_i32_1 = arith.constant 0 : i32
    return %c0_i32, %c0_i32_0 : i32, i32
  }
  func.func @transform_6(%arg0: i32, %arg1: i32) -> (i32, i32) {
    %c0_i32 = arith.constant 0 : i32
    %c0_i32_0 = arith.constant 0 : i32
    %c0_i32_1 = arith.constant 0 : i32
    return %c0_i32, %c0_i32_0 : i32, i32
  }
  func.func @transform_7(%arg0: i32, %arg1: i32) -> (i32, i32) {
    %c0_i32 = arith.constant 0 : i32
    %c0_i32_0 = arith.constant 0 : i32
    %c0_i32_1 = arith.constant 0 : i32
    return %c0_i32, %c0_i32_0 : i32, i32
  }
  func.func @transform_8(%arg0: i32, %arg1: i32) -> (i32, i32) {
    %c0_i32 = arith.constant 0 : i32
    %c0_i32_0 = arith.constant 0 : i32
    %c0_i32_1 = arith.constant 0 : i32
    return %c0_i32, %c0_i32_0 : i32, i32
  }
  func.func @transform_9(%arg0: i32, %arg1: i32) -> (i32, i32, i32) {
    %c0_i32 = arith.constant 0 : i32
    %c0_i32_0 = arith.constant 0 : i32
    return %arg0, %c0_i32, %arg1 : i32, i32, i32
  }
}

</mosaic_0001>

<llo_original>
// kernel: feature_propagator_forward.1
$region0: #{feature_propagator_forward.1}
  #allocation0 [shape = 'u32[]', space=smem, size = 0x4, offset = 0x4, fixed_abs, tag = 'smem constant byte address 0x4 - core index']
  #allocation1 [shape = 'u32[144,128]{1,0:T(1,128)}', space=vmem, size = 0x12000, scoped, tag = 'internal scratch']
  %s0 = inlined_call_operand.hbm [shape: f32[2,3,16], index: 0, kind: input, shape index: {}]
  %s1 = inlined_call_operand.hbm [shape: f32[2,8,3], index: 1, kind: input, shape index: {}]
  %s2 = inlined_call_operand.hbm [shape: f32[2,6,8], index: 2, kind: input, shape index: {}]
  %s3 = inlined_call_operand.hbm [shape: f32[2,4,16], index: 3, kind: input, shape index: {}]
  %s4 = inlined_call_operand.hbm [shape: bf16[32,6], index: 4, kind: input, shape index: {}]
  %s5 = inlined_call_operand.hbm [shape: bf16[32,4], index: 5, kind: input, shape index: {}]
  %s6 = inlined_call_operand.hbm [shape: f32[32,1], index: 6, kind: input, shape index: {}]
  %s7 = inlined_call_operand.hbm [shape: bf16[16,32], index: 7, kind: input, shape index: {}]
  %s8 = inlined_call_operand.hbm [shape: f32[16,1], index: 8, kind: input, shape index: {}]
  %s9 = inlined_call_operand.hbm [shape: f32[2,16,16], index: 9, kind: output, shape index: {}]
  %s10 = sld [smem:[#allocation0]]
  $region105: #{feature_propagator_forward.1} parent=0
    _
  %s12 = ssub.s32 1, %s10
  %s13 = scalar_select 0, %s12, %s10
  $region1: #{feature_propagator_forward.1} parent=0
    #allocation2 [shape = 'u8[4096]{0}', space=vmem, size = 0x1000, scoped, tag = 'input window, operand 0']
    #allocation3 [shape = 's32[2]{0}', space=sflag, size = 0x8, scoped, tag = 'scoped memory for feature_propagator_forward.1']
    #allocation4 [shape = 's32[2]{0}', space=sflag, size = 0x8, scoped, tag = 'scoped memory for feature_propagator_forward.1']
    #allocation5 [shape = 'u8[8192]{0}', space=vmem, size = 0x2000, scoped, tag = 'input window, operand 1']
    #allocation6 [shape = 's32[2]{0}', space=sflag, size = 0x8, scoped, tag = 'scoped memory for feature_propagator_forward.1']
    #allocation7 [shape = 'u8[8192]{0}', space=vmem, size = 0x2000, scoped, tag = 'input window, operand 2']
    #allocation8 [shape = 'u8[4096]{0}', space=vmem, size = 0x1000, scoped, tag = 'input window, operand 3']
    #allocation9 [shape = 's32[2]{0}', space=sflag, size = 0x8, scoped, tag = 'scoped memory for feature_propagator_forward.1']
    #allocation10 [shape = 'u8[8192]{0}', space=vmem, size = 0x2000, scoped, tag = 'input window, operand 4, single buffered']
    #allocation11 [shape = 'u8[8192]{0}', space=vmem, size = 0x2000, scoped, tag = 'input window, operand 5, single buffered']
    #allocation12 [shape = 's32[1]{0}', space=sflag, size = 0x4, scoped, tag = 'scoped memory for feature_propagator_forward.1']
    #allocation13 [shape = 'u8[16384]{0}', space=vmem, size = 0x4000, scoped, tag = 'input window, operand 6, single buffered']
    #allocation14 [shape = 'u8[4096]{0}', space=vmem, size = 0x1000, scoped, tag = 'input window, operand 7, single buffered']
    #allocation15 [shape = 's32[1]{0}', space=sflag, size = 0x4, scoped, tag = 'scoped memory for feature_propagator_forward.1']
    #allocation16 [shape = 'u8[8192]{0}', space=vmem, size = 0x2000, scoped, tag = 'input window, operand 8, single buffered']
    #allocation17 [shape = 'u8[16384]{0}', space=vmem, size = 0x4000, scoped, tag = 'output window, operand 0']
    %14 = vsyncpa [#allocation3], 0
    %s15 = scalar_lea.sflag [#allocation3], 1
    %16 = vsyncpa %s15, 0
    %17 = vsyncpa [#allocation6], 0
    %s18 = scalar_lea.sflag [#allocation6], 1
    %19 = vsyncpa %s18, 0
    %20 = vsyncpa [#allocation9], 0
    %s21 = scalar_lea.sflag [#allocation9], 1
    %22 = vsyncpa %s21, 0
    %23 = vsyncpa [#allocation12], 0
    %24 = vsyncpa [#allocation15], 0
    %25 = vsyncpa [#allocation4], 0
    %s26 = scalar_lea.sflag [#allocation4], 1
    %27 = vsyncpa %s26, 0
    loop: start=0, step=1, limit=4
    $region2: #{feature_propagator_forward.1} parent=1 // loop_pre_header
      _
    $region3: #{feature_propagator_forward.1} parent=1 // loop_header
      %s29 = sphi 0, %s33
      %p30 = scmp.ge.s32.totalorder %s29, 4
      %s36 = sphi 0, %s48
      %s37 = sphi 0, %s44
      %s38 = sphi 0, %s36
      %s39 = sphi 0, %s37
      %s40 = sphi 0, %s38
      %s41 = sphi 0, %s39
      %s53 = sphi 0, %s55
      %s56 = sphi 0, %s53
      %s57 = sphi 0, %s56
      %s73 = sphi 0, %s57
      %s79 = sphi 0, %s81
      %s82 = sphi 0, %s79
      %s83 = sphi 0, %s82
      %s99 = sphi 0, %s83
      %s105 = sphi 0, %s107
      %s108 = sphi 0, %s105
      %s109 = sphi 0, %s108
      %s125 = sphi 0, %s109
      %s133 = sphi 0, %s135
      %s136 = sphi 0, %s133
      %s137 = sphi 0, %s136
      %s153 = sphi 0, %s137
      %s157 = sphi 0, %s157
      %s159 = sphi 0, %s157
      %s160 = sphi 0, %s159
      %s174 = sphi 0, %s160
      %s178 = sphi 0, %s178
      %s180 = sphi 0, %s178
      %s181 = sphi 0, %s180
      %s195 = sphi 0, %s181
      %s199 = sphi 0, %s199
      %s201 = sphi 0, %s199
      %s202 = sphi 0, %s201
      %s216 = sphi 0, %s202
      %s220 = sphi 0, %s220
      %s222 = sphi 0, %s220
      %s223 = sphi 0, %s222
      %s237 = sphi 0, %s223
      %s241 = sphi 0, %s241
      %s243 = sphi 0, %s241
      %s244 = sphi 0, %s243
      %s258 = sphi 0, %s244
      %s266 = sphi 0, %s268
      %s269 = sphi 0, %s266
      %s270 = sphi 0, %s269
      %s286 = sphi 0, %s270
    $region4: #{feature_propagator_forward.1} parent=1 // loop_header_branch
      %32 = sbr.rel (%p30) target = $region8
    $region5: #{feature_propagator_forward.1} parent=1 // loop_body
      %s34 = ssub.s32 %s29, 1
      %s35 = ssub.s32 %s29, 2
      %s42 = sadd.s32 1, %s37
      %p43 = scmp.ge.s32.totalorder %s42, 1
      %s44 = scalar_select %p43, 0, %s42
      %s45 = sadd.s32 1, %s36
      %s46 = scalar_select %p43, %s45, %s36
      %p47 = scmp.ge.s32.totalorder %s46, 2
      %s48 = scalar_select %p47, 0, %s46
      %s49 = ssub.s32 %s36, %s48
      %s50 = ssub.s32 %s37, %s44
      %s51 = sor.u32 %s49, %s50
      %p52 = scmp.eq.s32.totalorder %s51, 0
      %s54 = sadd.s32 %s53, 1
      %s55 = scalar_select %p52, %s53, %s54
      %p58 = pneg %p52
      %p59 = scmp.eq.s32.totalorder %s29, 1
      %p60 = por %p58, %p59
      %p61 = scmp.ne.s32.totalorder %s53, %s56
      %p62 = scmp.eq.s32.totalorder %s29, 0
      %p63 = por %p61, %p62
      %p64 = scmp.ne.s32.totalorder %s53, %s56
      %p65 = scmp.eq.s32.totalorder %s34, 1
      %p66 = por %p64, %p65
      %p67 = scmp.ne.s32.totalorder %s56, %s57
      %p68 = scmp.eq.s32.totalorder %s34, 0
      %p69 = por %p67, %p68
      %p70 = scmp.ne.s32.totalorder %s56, %s57
      %p71 = scmp.eq.s32.totalorder %s35, 1
      %p72 = por %p70, %p71
      %p74 = scmp.ne.s32.totalorder %s57, %s73
      %p75 = scmp.eq.s32.totalorder %s35, 0
      %p76 = por %p74, %p75
      %s77 = ssub.s32 %s36, %s48
      %p78 = scmp.eq.s32.totalorder %s77, 0
      %s80 = sadd.s32 %s79, 1
      %s81 = scalar_select %p78, %s79, %s80
      %p84 = pneg %p78
      %p85 = scmp.eq.s32.totalorder %s29, 1
      %p86 = por %p84, %p85
      %p87 = scmp.ne.s32.totalorder %s79, %s82
      %p88 = scmp.eq.s32.totalorder %s29, 0
      %p89 = por %p87, %p88
      %p90 = scmp.ne.s32.totalorder %s79, %s82
      %p91 = scmp.eq.s32.totalorder %s34, 1
      %p92 = por %p90, %p91
      %p93 = scmp.ne.s32.totalorder %s82, %s83
      %p94 = scmp.eq.s32.totalorder %s34, 0
      %p95 = por %p93, %p94
      %p96 = scmp.ne.s32.totalorder %s82, %s83
      %p97 = scmp.eq.s32.totalorder %s35, 1
      %p98 = por %p96, %p97
      %p100 = scmp.ne.s32.totalorder %s83, %s99
      %p101 = scmp.eq.s32.totalorder %s35, 0
      %p102 = por %p100, %p101
      %s103 = ssub.s32 %s36, %s48
      %p104 = scmp.eq.s32.totalorder %s103, 0
      %s106 = sadd.s32 %s105, 1
      %s107 = scalar_select %p104, %s105, %s106
      %p110 = pneg %p104
      %p111 = scmp.eq.s32.totalorder %s29, 1
      %p112 = por %p110, %p111
      %p113 = scmp.ne.s32.totalorder %s105, %s108
      %p114 = scmp.eq.s32.totalorder %s29, 0
      %p115 = por %p113, %p114
      %p116 = scmp.ne.s32.totalorder %s105, %s108
      %p117 = scmp.eq.s32.totalorder %s34, 1
      %p118 = por %p116, %p117
      %p119 = scmp.ne.s32.totalorder %s108, %s109
      %p120 = scmp.eq.s32.totalorder %s34, 0
      %p121 = por %p119, %p120
      %p122 = scmp.ne.s32.totalorder %s108, %s109
      %p123 = scmp.eq.s32.totalorder %s35, 1
      %p124 = por %p122, %p123
      %p126 = scmp.ne.s32.totalorder %s109, %s125
      %p127 = scmp.eq.s32.totalorder %s35, 0
      %p128 = por %p126, %p127
      %s129 = ssub.s32 %s36, %s48
      %s130 = ssub.s32 %s37, %s44
      %s131 = sor.u32 %s129, %s130
      %p132 = scmp.eq.s32.totalorder %s131, 0
      %s134 = sadd.s32 %s133, 1
      %s135 = scalar_select %p132, %s133, %s134
      %p138 = pneg %p132
      %p139 = scmp.eq.s32.totalorder %s29, 1
      %p140 = por %p138, %p139
      %p141 = scmp.ne.s32.totalorder %s133, %s136
      %p142 = scmp.eq.s32.totalorder %s29, 0
      %p143 = por %p141, %p142
      %p144 = scmp.ne.s32.totalorder %s133, %s136
      %p145 = scmp.eq.s32.totalorder %s34, 1
      %p146 = por %p144, %p145
      %p147 = scmp.ne.s32.totalorder %s136, %s137
      %p148 = scmp.eq.s32.totalorder %s34, 0
      %p149 = por %p147, %p148
      %p150 = scmp.ne.s32.totalorder %s136, %s137
      %p151 = scmp.eq.s32.totalorder %s35, 1
      %p152 = por %p150, %p151
      %p154 = scmp.ne.s32.totalorder %s137, %s153
      %p155 = scmp.eq.s32.totalorder %s35, 0
      %p156 = por %p154, %p155
      %s158 = sadd.s32 %s157, 1
      %p161 = scmp.eq.s32.totalorder %s29, 1
      %p162 = scmp.ne.s32.totalorder %s157, %s159
      %p163 = scmp.eq.s32.totalorder %s29, 0
      %p164 = por %p162, %p163
      %p165 = scmp.ne.s32.totalorder %s157, %s159
      %p166 = scmp.eq.s32.totalorder %s34, 1
      %p167 = por %p165, %p166
      %p168 = scmp.ne.s32.totalorder %s159, %s160
      %p169 = scmp.eq.s32.totalorder %s34, 0
      %p170 = por %p168, %p169
      %p171 = scmp.ne.s32.totalorder %s159, %s160
      %p172 = scmp.eq.s32.totalorder %s35, 1
      %p173 = por %p171, %p172
      %p175 = scmp.ne.s32.totalorder %s160, %s174
      %p176 = scmp.eq.s32.totalorder %s35, 0
      %p177 = por %p175, %p176
      %s179 = sadd.s32 %s178, 1
      %p182 = scmp.eq.s32.totalorder %s29, 1
      %p183 = scmp.ne.s32.totalorder %s178, %s180
      %p184 = scmp.eq.s32.totalorder %s29, 0
      %p185 = por %p183, %p184
      %p186 = scmp.ne.s32.totalorder %s178, %s180
      %p187 = scmp.eq.s32.totalorder %s34, 1
      %p188 = por %p186, %p187
      %p189 = scmp.ne.s32.totalorder %s180, %s181
      %p190 = scmp.eq.s32.totalorder %s34, 0
      %p191 = por %p189, %p190
      %p192 = scmp.ne.s32.totalorder %s180, %s181
      %p193 = scmp.eq.s32.totalorder %s35, 1
      %p194 = por %p192, %p193
      %p196 = scmp.ne.s32.totalorder %s181, %s195
      %p197 = scmp.eq.s32.totalorder %s35, 0
      %p198 = por %p196, %p197
      %s200 = sadd.s32 %s199, 1
      %p203 = scmp.eq.s32.totalorder %s29, 1
      %p204 = scmp.ne.s32.totalorder %s199, %s201
      %p205 = scmp.eq.s32.totalorder %s29, 0
      %p206 = por %p204, %p205
      %p207 = scmp.ne.s32.totalorder %s199, %s201
      %p208 = scmp.eq.s32.totalorder %s34, 1
      %p209 = por %p207, %p208
      %p210 = scmp.ne.s32.totalorder %s201, %s202
      %p211 = scmp.eq.s32.totalorder %s34, 0
      %p212 = por %p210, %p211
      %p213 = scmp.ne.s32.totalorder %s201, %s202
      %p214 = scmp.eq.s32.totalorder %s35, 1
      %p215 = por %p213, %p214
      %p217 = scmp.ne.s32.totalorder %s202, %s216
      %p218 = scmp.eq.s32.totalorder %s35, 0
      %p219 = por %p217, %p218
      %s221 = sadd.s32 %s220, 1
      %p224 = scmp.eq.s32.totalorder %s29, 1
      %p225 = scmp.ne.s32.totalorder %s220, %s222
      %p226 = scmp.eq.s32.totalorder %s29, 0
      %p227 = por %p225, %p226
      %p228 = scmp.ne.s32.totalorder %s220, %s222
      %p229 = scmp.eq.s32.totalorder %s34, 1
      %p230 = por %p228, %p229
      %p231 = scmp.ne.s32.totalorder %s222, %s223
      %p232 = scmp.eq.s32.totalorder %s34, 0
      %p233 = por %p231, %p232
      %p234 = scmp.ne.s32.totalorder %s222, %s223
      %p235 = scmp.eq.s32.totalorder %s35, 1
      %p236 = por %p234, %p235
      %p238 = scmp.ne.s32.totalorder %s223, %s237
      %p239 = scmp.eq.s32.totalorder %s35, 0
      %p240 = por %p238, %p239
      %s242 = sadd.s32 %s241, 1
      %p245 = scmp.eq.s32.totalorder %s29, 1
      %p246 = scmp.ne.s32.totalorder %s241, %s243
      %p247 = scmp.eq.s32.totalorder %s29, 0
      %p248 = por %p246, %p247
      %p249 = scmp.ne.s32.totalorder %s241, %s243
      %p250 = scmp.eq.s32.totalorder %s34, 1
      %p251 = por %p249, %p250
      %p252 = scmp.ne.s32.totalorder %s243, %s244
      %p253 = scmp.eq.s32.totalorder %s34, 0
      %p254 = por %p252, %p253
      %p255 = scmp.ne.s32.totalorder %s243, %s244
      %p256 = scmp.eq.s32.totalorder %s35, 1
      %p257 = por %p255, %p256
      %p259 = scmp.ne.s32.totalorder %s244, %s258
      %p260 = scmp.eq.s32.totalorder %s35, 0
      %p261 = por %p259, %p260
      %s262 = ssub.s32 %s36, %s48
      %s263 = ssub.s32 %s37, %s44
      %s264 = sor.u32 %s262, %s263
      %p265 = scmp.eq.s32.totalorder %s264, 0
      %s267 = sadd.s32 %s266, 1
      %s268 = scalar_select %p265, %s266, %s267
      %p271 = pneg %p265
      %p272 = scmp.eq.s32.totalorder %s29, 1
      %p273 = por %p271, %p272
      %p274 = scmp.ne.s32.totalorder %s266, %s269
      %p275 = scmp.eq.s32.totalorder %s29, 0
      %p276 = por %p274, %p275
      %p277 = scmp.ne.s32.totalorder %s266, %s269
      %p278 = scmp.eq.s32.totalorder %s34, 1
      %p279 = por %p277, %p278
      %p280 = scmp.ne.s32.totalorder %s269, %s270
      %p281 = scmp.eq.s32.totalorder %s34, 0
      %p282 = por %p280, %p281
      %p283 = scmp.ne.s32.totalorder %s269, %s270
      %p284 = scmp.eq.s32.totalorder %s35, 1
      %p285 = por %p283, %p284
      %p287 = scmp.ne.s32.totalorder %s270, %s286
      %p288 = scmp.eq.s32.totalorder %s35, 0
      %p289 = por %p287, %p288
      %p290 = scmp.le.s32.totalorder 1, %s29
      %p291 = scmp.lt.s32.totalorder %s29, 3
      %p292 = pnand %p290, %p291
      %p293 = pneg %p292
      // Predicated region
      $region9: #{feature_propagator_forward.1} parent=5 // pred_check
        _
      $region10: #{feature_propagator_forward.1} parent=5 // pred_check_branch
        %295 = sbr.rel (%p292) target = $region12
      $region11: #{feature_propagator_forward.1} parent=5 // pred_region
        %s296 = ssub.s32 %s29, 1
        // Predicated region
        $region13: #{feature_propagator_forward.1} parent=11 // pred_check
          %p297 = pneg %p170
        $region14: #{feature_propagator_forward.1} parent=11 // pred_check_branch
          %299 = sbr.rel (%p297) target = $region16
        $region15: #{feature_propagator_forward.1} parent=11 // pred_region
          %s301 = ssub.s32 256, 256
          %302 = vsyncadd [#allocation9], %s301
          %s303 = sshll.u32 [#allocation10], 4
          %s304 = int_to_ptr.vmem [resolvable:$true] %s303
          %309 = dma.hbm_to_vmem [thread:$0]  %s4, 256, %s304, [#allocation9], 64, 64, 4
        $region16: #{feature_propagator_forward.1} parent=11 // pred_fallthru
          _
        // Predicated region
        $region17: #{feature_propagator_forward.1} parent=11 // pred_check
          %p310 = pneg %p191
        $region18: #{feature_propagator_forward.1} parent=11 // pred_check_branch
          %312 = sbr.rel (%p310) target = $region20
        $region19: #{feature_propagator_forward.1} parent=11 // pred_region
          %s314 = ssub.s32 256, 256
          %315 = vsyncadd [#allocation12], %s314
          %s316 = sshll.u32 [#allocation11], 4
          %s317 = int_to_ptr.vmem [resolvable:$true] %s316
          %322 = dma.hbm_to_vmem [thread:$0]  %s5, 256, %s317, [#allocation12], 64, 64, 4
        $region20: #{feature_propagator_forward.1} parent=11 // pred_fallthru
          _
        // Predicated region
        $region21: #{feature_propagator_forward.1} parent=11 // pred_check
          %p323 = pneg %p212
        $region22: #{feature_propagator_forward.1} parent=11 // pred_check_branch
          %325 = sbr.rel (%p323) target = $region24
        $region23: #{feature_propagator_forward.1} parent=11 // pred_region
          %s327 = ssub.s32 512, 512
          %328 = vsyncadd [#allocation12], %s327
          %s329 = sshll.u32 [#allocation13], 4
          %s330 = int_to_ptr.vmem [resolvable:$true] %s329
          %335 = dma.hbm_to_vmem [thread:$0]  %s6, 512, %s330, [#allocation12], 128, 128, 8
        $region24: #{feature_propagator_forward.1} parent=11 // pred_fallthru
          _
        // Predicated region
        $region25: #{feature_propagator_forward.1} parent=11 // pred_check
          %p336 = pneg %p233
        $region26: #{feature_propagator_forward.1} parent=11 // pred_check_branch
          %338 = sbr.rel (%p336) target = $region28
        $region27: #{feature_propagator_forward.1} parent=11 // pred_region
          %s340 = ssub.s32 128, 128
          %341 = vsyncadd [#allocation15], %s340
          %s342 = sshll.u32 [#allocation14], 4
          %s343 = int_to_ptr.vmem [resolvable:$true] %s342
          %348 = dma.hbm_to_vmem [thread:$0]  %s7, 128, %s343, [#allocation15], 64, 64, 4
        $region28: #{feature_propagator_forward.1} parent=11 // pred_fallthru
          _
        // Predicated region
        $region29: #{feature_propagator_forward.1} parent=11 // pred_check
          %p349 = pneg %p254
        $region30: #{feature_propagator_forward.1} parent=11 // pred_check_branch
          %351 = sbr.rel (%p349) target = $region32
        $region31: #{feature_propagator_forward.1} parent=11 // pred_region
          %s353 = ssub.s32 256, 256
          %354 = vsyncadd [#allocation15], %s353
          %s355 = sshll.u32 [#allocation16], 4
          %s356 = int_to_ptr.vmem [resolvable:$true] %s355
          %361 = dma.hbm_to_vmem [thread:$0]  %s8, 256, %s356, [#allocation15], 128, 128, 8
        $region32: #{feature_propagator_forward.1} parent=11 // pred_fallthru
          _
      $region12: #{feature_propagator_forward.1} parent=5 // pred_fallthru
        _
      %p362 = scmp.lt.s32.totalorder %s29, 2
      // Predicated region
      $region33: #{feature_propagator_forward.1} parent=5 // pred_check
        %p363 = pneg %p362
      $region34: #{feature_propagator_forward.1} parent=5 // pred_check_branch
        %365 = sbr.rel (%p363) target = $region36
      $region35: #{feature_propagator_forward.1} parent=5 // pred_region
        // Predicated region
        $region37: #{feature_propagator_forward.1} parent=35 // pred_check
          %p366 = pneg %p63
        $region38: #{feature_propagator_forward.1} parent=35 // pred_check_branch
          %368 = sbr.rel (%p366) target = $region40
        $region39: #{feature_propagator_forward.1} parent=35 // pred_region
          %s369 = sand.u32 %s53, 1
          %s370 = scalar_lea.sflag [#allocation3], %s369
          %s371 = sand.u32 %s53, 1
          %s372 = smul.addr %s371, 4
          %s373 = scalar_lea.vmem [#allocation2], %s372
          %s375 = ssub.s32 64, 64
          %376 = vsyncadd %s370, %s375
          %s377 = sadd.s32 %s37, %s36
          %s378 = smul.addr %s377, 64
          %s379 = scalar_lea.hbm %s0, %s378
          %s381 = sshll.u32 %s373, 4
          %s382 = int_to_ptr.vmem [resolvable:$true] %s381
          %384 = dma.hbm_to_vmem [thread:$0]  %s379, 64, %s382, %s370
        $region40: #{feature_propagator_forward.1} parent=35 // pred_fallthru
          _
        // Predicated region
        $region41: #{feature_propagator_forward.1} parent=35 // pred_check
          %p385 = pneg %p89
        $region42: #{feature_propagator_forward.1} parent=35 // pred_check_branch
          %387 = sbr.rel (%p385) target = $region44
        $region43: #{feature_propagator_forward.1} parent=35 // pred_region
          %s388 = sand.u32 %s29, 1
          %s389 = scalar_lea.sflag [#allocation6], %s388
          %s390 = sand.u32 %s79, 1
          %s391 = smul.addr %s390, 8
          %s392 = scalar_lea.vmem [#allocation5], %s391
          %s394 = ssub.s32 128, 128
          %395 = vsyncadd %s389, %s394
          %s396 = smul.addr %s36, 128
          %s397 = scalar_lea.hbm %s1, %s396
          %s399 = sshll.u32 %s392, 4
          %s400 = int_to_ptr.vmem [resolvable:$true] %s399
          %402 = dma.hbm_to_vmem [thread:$0]  %s397, 128, %s400, %s389
        $region44: #{feature_propagator_forward.1} parent=35 // pred_fallthru
          _
        // Predicated region
        $region45: #{feature_propagator_forward.1} parent=35 // pred_check
          %p403 = pneg %p115
        $region46: #{feature_propagator_forward.1} parent=35 // pred_check_branch
          %405 = sbr.rel (%p403) target = $region48
        $region47: #{feature_propagator_forward.1} parent=35 // pred_region
          %s406 = sand.u32 %s29, 1
          %s407 = scalar_lea.sflag [#allocation6], %s406
          %s408 = sand.u32 %s105, 1
          %s409 = smul.addr %s408, 8
          %s410 = scalar_lea.vmem [#allocation7], %s409
          %s412 = ssub.s32 128, 128
          %413 = vsyncadd %s407, %s412
          %s414 = smul.addr %s36, 128
          %s415 = scalar_lea.hbm %s2, %s414
          %s417 = sshll.u32 %s410, 4
          %s418 = int_to_ptr.vmem [resolvable:$true] %s417
          %420 = dma.hbm_to_vmem [thread:$0]  %s415, 128, %s418, %s407
        $region48: #{feature_propagator_forward.1} parent=35 // pred_fallthru
          _
        // Predicated region
        $region49: #{feature_propagator_forward.1} parent=35 // pred_check
          %p421 = pneg %p143
        $region50: #{feature_propagator_forward.1} parent=35 // pred_check_branch
          %423 = sbr.rel (%p421) target = $region52
        $region51: #{feature_propagator_forward.1} parent=35 // pred_region
          %s424 = sand.u32 %s29, 1
          %s425 = scalar_lea.sflag [#allocation9], %s424
          %s426 = sand.u32 %s133, 1
          %s427 = smul.addr %s426, 4
          %s428 = scalar_lea.vmem [#allocation8], %s427
          %s430 = ssub.s32 64, 64
          %431 = vsyncadd %s425, %s430
          %s432 = sadd.s32 %s37, %s36
          %s433 = smul.addr %s432, 64
          %s434 = scalar_lea.hbm %s3, %s433
          %s436 = sshll.u32 %s428, 4
          %s437 = int_to_ptr.vmem [resolvable:$true] %s436
          %439 = dma.hbm_to_vmem [thread:$0]  %s434, 64, %s437, %s425
        $region52: #{feature_propagator_forward.1} parent=35 // pred_fallthru
          _
      $region36: #{feature_propagator_forward.1} parent=5 // pred_fallthru
        _
      %p440 = scmp.le.s32.totalorder 1, %s29
      %p441 = scmp.lt.s32.totalorder %s29, 3
      %p442 = pnand %p440, %p441
      %p443 = pneg %p442
      // Predicated region
      $region53: #{feature_propagator_forward.1} parent=5 // pred_check
        _
      $region54: #{feature_propagator_forward.1} parent=5 // pred_check_branch
        %445 = sbr.rel (%p442) target = $region56
      $region55: #{feature_propagator_forward.1} parent=5 // pred_region
        %s446 = ssub.s32 %s29, 1
        %s447 = sand.u32 %s56, 1
        %s448 = scalar_lea.sflag [#allocation3], %s447
        %s449 = sand.u32 %s56, 1
        %s450 = smul.addr %s449, 4
        %s451 = scalar_lea.vmem [#allocation2], %s450
        // Predicated region
        $region57: #{feature_propagator_forward.1} parent=55 // pred_check
          %p452 = pneg %p69
        $region58: #{feature_propagator_forward.1} parent=55 // pred_check_branch
          %454 = sbr.rel (%p452) target = $region60
        $region59: #{feature_propagator_forward.1} parent=55 // pred_region
          %455 = dma.done %s448, 64
        $region60: #{feature_propagator_forward.1} parent=55 // pred_fallthru
          _
        %s456 = sand.u32 %s34, 1
        %s457 = scalar_lea.sflag [#allocation6], %s456
        %s458 = sand.u32 %s82, 1
        %s459 = smul.addr %s458, 8
        %s460 = scalar_lea.vmem [#allocation5], %s459
        // Predicated region
        $region61: #{feature_propagator_forward.1} parent=55 // pred_check
          %p461 = pneg %p95
        $region62: #{feature_propagator_forward.1} parent=55 // pred_check_branch
          %463 = sbr.rel (%p461) target = $region64
        $region63: #{feature_propagator_forward.1} parent=55 // pred_region
          %464 = dma.done %s457, 128
        $region64: #{feature_propagator_forward.1} parent=55 // pred_fallthru
          _
        %s465 = sand.u32 %s34, 1
        %s466 = scalar_lea.sflag [#allocation6], %s465
        %s467 = sand.u32 %s108, 1
        %s468 = smul.addr %s467, 8
        %s469 = scalar_lea.vmem [#allocation7], %s468
        // Predicated region
        $region65: #{feature_propagator_forward.1} parent=55 // pred_check
          %p470 = pneg %p121
        $region66: #{feature_propagator_forward.1} parent=55 // pred_check_branch
          %472 = sbr.rel (%p470) target = $region68
        $region67: #{feature_propagator_forward.1} parent=55 // pred_region
          %473 = dma.done %s466, 128
        $region68: #{feature_propagator_forward.1} parent=55 // pred_fallthru
          _
        %s474 = sand.u32 %s34, 1
        %s475 = scalar_lea.sflag [#allocation9], %s474
        %s476 = sand.u32 %s136, 1
        %s477 = smul.addr %s476, 4
        %s478 = scalar_lea.vmem [#allocation8], %s477
        // Predicated region
        $region69: #{feature_propagator_forward.1} parent=55 // pred_check
          %p479 = pneg %p149
        $region70: #{feature_propagator_forward.1} parent=55 // pred_check_branch
          %481 = sbr.rel (%p479) target = $region72
        $region71: #{feature_propagator_forward.1} parent=55 // pred_region
          %482 = dma.done %s475, 64
        $region72: #{feature_propagator_forward.1} parent=55 // pred_fallthru
          _
        // Predicated region
        $region73: #{feature_propagator_forward.1} parent=55 // pred_check
          %p483 = pneg %p170
        $region74: #{feature_propagator_forward.1} parent=55 // pred_check_branch
          %485 = sbr.rel (%p483) target = $region76
        $region75: #{feature_propagator_forward.1} parent=55 // pred_region
          %486 = dma.done [#allocation9], 256
        $region76: #{feature_propagator_forward.1} parent=55 // pred_fallthru
          _
        // Predicated region
        $region77: #{feature_propagator_forward.1} parent=55 // pred_check
          %p487 = pneg %p191
        $region78: #{feature_propagator_forward.1} parent=55 // pred_check_branch
          %489 = sbr.rel (%p487) target = $region80
        $region79: #{feature_propagator_forward.1} parent=55 // pred_region
          %490 = dma.done [#allocation12], 256
        $region80: #{feature_propagator_forward.1} parent=55 // pred_fallthru
          _
        // Predicated region
        $region81: #{feature_propagator_forward.1} parent=55 // pred_check
          %p491 = pneg %p212
        $region82: #{feature_propagator_forward.1} parent=55 // pred_check_branch
          %493 = sbr.rel (%p491) target = $region84
        $region83: #{feature_propagator_forward.1} parent=55 // pred_region
          %494 = dma.done [#allocation12], 512
        $region84: #{feature_propagator_forward.1} parent=55 // pred_fallthru
          _
        // Predicated region
        $region85: #{feature_propagator_forward.1} parent=55 // pred_check
          %p495 = pneg %p233
        $region86: #{feature_propagator_forward.1} parent=55 // pred_check_branch
          %497 = sbr.rel (%p495) target = $region88
        $region87: #{feature_propagator_forward.1} parent=55 // pred_region
          %498 = dma.done [#allocation15], 128
        $region88: #{feature_propagator_forward.1} parent=55 // pred_fallthru
          _
        // Predicated region
        $region89: #{feature_propagator_forward.1} parent=55 // pred_check
          %p499 = pneg %p254
        $region90: #{feature_propagator_forward.1} parent=55 // pred_check_branch
          %501 = sbr.rel (%p499) target = $region92
        $region91: #{feature_propagator_forward.1} parent=55 // pred_region
          %502 = dma.done [#allocation15], 256
        $region92: #{feature_propagator_forward.1} parent=55 // pred_fallthru
          _
        %s503 = sand.u32 %s56, 1
        %s504 = scalar_lea.sflag [#allocation3], %s503
        %s505 = sand.u32 %s56, 1
        %s506 = smul.addr %s505, 4
        %s507 = scalar_lea.vmem [#allocation2], %s506
        %p508 = pneg %p69
        %p509 = pneg %p66
        %s510 = sand.u32 %s34, 1
        %s511 = scalar_lea.sflag [#allocation6], %s510
        %s512 = sand.u32 %s82, 1
        %s513 = smul.addr %s512, 8
        %s514 = scalar_lea.vmem [#allocation5], %s513
        %p515 = pneg %p95
        %p516 = pneg %p92
        %s517 = sand.u32 %s34, 1
        %s518 = scalar_lea.sflag [#allocation6], %s517
        %s519 = sand.u32 %s108, 1
        %s520 = smul.addr %s519, 8
        %s521 = scalar_lea.vmem [#allocation7], %s520
        %p522 = pneg %p121
        %p523 = pneg %p118
        %s524 = sand.u32 %s34, 1
        %s525 = scalar_lea.sflag [#allocation9], %s524
        %s526 = sand.u32 %s136, 1
        %s527 = smul.addr %s526, 4
        %s528 = scalar_lea.vmem [#allocation8], %s527
        %p529 = pneg %p149
        %p530 = pneg %p146
        %p531 = pneg %p170
        %p532 = pneg %p167
        %p533 = pneg %p191
        %p534 = pneg %p188
        %p535 = pneg %p212
        %p536 = pneg %p209
        %p537 = pneg %p233
        %p538 = pneg %p230
        %p539 = pneg %p254
        %p540 = pneg %p251
        %p541 = pneg %p282
        %p542 = pneg %p279
        %s543 = sand.u32 %s269, 1
        %s544 = scalar_lea.sflag [#allocation4], %s543
        %s545 = sand.u32 %s269, 1
        %s546 = smul.addr %s545, 16
        %s547 = scalar_lea.vmem [#allocation17], %s546
        %v549 = vld [vmem:[%s451] sm:$0x7]
        %v550 = vld [vmem:[%s460] sm:$0xff]
        %v551 = vld [vmem:[%s469] sm:$0x3f]
        %v552 = vmul.f32 %v549, %v549
        %vm553 = vcmask 124928
        %v554 = vsel %vm553, %v552, 0.0
        %v555 = vrot.slane %v554, 4
        %v556 = vadd.f32 %v554, %v555
        %v557 = vrot.slane %v556, 2
        %v558 = vadd.f32 %v556, %v557
        %v559 = vrot.slane %v558, 1
        %v560 = vadd.f32 %v558, %v559
        %v561 = vmul.f32 %v550, %v550
        %vm562 = vcmask 23552
        %v563 = vsel %vm562, %v561, 0.0
        %564 = vadd.xlane.f32.xlu0 %v563
        %v565 = vpop.xlane.xlu0 %564
        %v567 = vsel %vm562, %v550, 0
        %vm569 = vcmask 1042432
        %v571 = vsel %vm569, %v549, 0
        %573 = vmatprep.subr.mxu0 0.0
        %574 = vmatpush1.msra.mxu0 %v571
        %575 = vmatprep.subr.mxu0 0.0
        %576 = vmatpush1.msra.mxu0 0.0
        %577 = vmatprep.subr.mxu0 0.0
        %578 = vmatpush1.msra.mxu0 0.0
        %579 = vmatprep.subr.mxu0 0.0
        %580 = vmatpush1.msra.mxu0 0.0
        %581 = vmatprep.subr.mxu0 0.0
        %582 = vmatpush1.msra.mxu0 0.0
        %583 = vmatprep.subr.mxu0 0.0
        %584 = vmatpush1.msra.mxu0 0.0
        %585 = vmatprep.subr.mxu0 0.0
        %586 = vmatpush1.msra.mxu0 0.0
        %587 = vmatprep.subr.mxu0 0.0
        %588 = vmatpush1.msra.mxu0 0.0
        %589 = vmatprep.subr.mxu0 0.0
        %590 = vmatpush1.msra.mxu0 0.0
        %591 = vmatprep.subr.mxu0 0.0
        %592 = vmatpush1.msra.mxu0 0.0
        %593 = vmatprep.subr.mxu0 0.0
        %594 = vmatpush1.msra.mxu0 0.0
        %595 = vmatprep.subr.mxu0 0.0
        %596 = vmatpush1.msra.mxu0 0.0
        %597 = vmatprep.subr.mxu0 0.0
        %598 = vmatpush1.msra.mxu0 0.0
        %599 = vmatprep.subr.mxu0 0.0
        %600 = vmatpush1.msra.mxu0 0.0
        %601 = vmatprep.subr.mxu0 0.0
        %602 = vmatpush1.msra.mxu0 0.0
        %603 = vmatprep.subr.mxu0 0.0
        %604 = vmatpush1.msra.mxu0 0.0
        %605 = vmatprep.subr.mxu0 0.0
        %606 = vmatpush1.msra.mxu0 0.0
        %607 = vmatprep.subr.mxu0 0.0
        %608 = vmatpush1.msra.mxu0 0.0
        %609 = vmatprep.subr.mxu0 0.0
        %610 = vmatpush1.msra.mxu0 0.0
        %611 = vmatprep.subr.mxu0 0.0
        %612 = vmatpush1.msra.mxu0 0.0
        %613 = vmatprep.subr.mxu0 0.0
        %614 = vmatpush1.msra.mxu0 0.0
        %615 = vmatprep.subr.mxu0 0.0
        %616 = vmatpush1.msra.mxu0 0.0
        %617 = vmatprep.subr.mxu0 0.0
        %618 = vmatpush1.msra.mxu0 0.0
        %619 = vmatprep.subr.mxu0 0.0
        %620 = vmatpush1.msra.mxu0 0.0
        %621 = vmatprep.subr.mxu0 0.0
        %622 = vmatpush1.msra.mxu0 0.0
        %623 = vmatprep.subr.mxu0 0.0
        %624 = vmatpush1.msra.mxu0 0.0
        %625 = vmatprep.subr.mxu0 0.0
        %626 = vmatpush1.msra.mxu0 0.0
        %627 = vmatprep.subr.mxu0 0.0
        %628 = vmatpush1.msra.mxu0 0.0
        %629 = vmatprep.subr.mxu0 0.0
        %630 = vmatpush1.msra.mxu0 0.0
        %631 = vmatprep.subr.mxu0 0.0
        %632 = vmatpush1.msra.mxu0 0.0
        %633 = vmatprep.subr.mxu0 0.0
        %634 = vmatpush1.msra.mxu0 0.0
        %635 = vmatprep.subr.mxu0 0.0
        %636 = vmatpush1.msra.mxu0 0.0
        %637 = vmatprep.mubr.f32.mxu0 0.0
        %638 = vmatmul.mubr.f32.gmra.mrb[0].mxu0 %v567
        %v639 = vpop.f32.mrb[0].mxu0
        %v640 = vadd.f32 0.0, %v639
        %v641 = vpop.f32.mrb[0].mxu0
        %642 = vdwg.mxu0
        %v643 = vadd.f32 %v565, %v560
        %v644 = vmul.f32 %v640, 2.0
        %v645 = vsub.f32 %v643, %v644
        %v646 = vmax.f32 %v645, 0.0
        %v647 = vlaneseq
        %v648 = vshrl.u32 %v647, 7
        %vm649 = vcmask 130048
        %v650 = vsel %vm649, %v646, inf
        %v651 = vrot.slane %v650, 4
        %v652 = vmin.f32 %v650, %v651
        %v653 = vrot.slane %v652, 2
        %v654 = vmin.f32 %v652, %v653
        %v655 = vrot.slane %v654, 1
        %v656 = vmin.f32 %v654, %v655
        %vm657 = vcmp.eq.f32.partialorder %v646, %v656
        %v658 = vsel %vm657, %v648, 8
        %v659 = vsel %vm649, %v658, 2147483647
        %v660 = vrot.slane %v659, 4
        %vm661 = vcmp.lt.s32.totalorder %v659, %v660
        %v662 = vsel %vm661, %v659, %v660
        %v663 = vrot.slane %v662, 2
        %vm664 = vcmp.lt.s32.totalorder %v662, %v663
        %v665 = vsel %vm664, %v662, %v663
        %v666 = vrot.slane %v665, 1
        %vm667 = vcmp.lt.s32.totalorder %v665, %v666
        %v668 = vsel %vm667, %v665, %v666
        %vm669 = vcmp.eq.s32.totalorder %v648, %v668
        %v670 = vrsqrt.pop %v656
        %v671 = vmul.f32 %v656, %v670
        %vm672 = vcmp.eq.f32.partialorder %v656, inf
        %v673 = vsel %vm672, %v656, %v671
        %vm674 = vcmp.eq.f32.partialorder %v656, 0.0
        %v675 = vand.u32 %v656, 2147483648
        %v676 = vsel %vm674, %v675, %v673
        %v677 = vadd.f32 %v676, 1e-08
        %v678 = vrcp.pop %v677
        %v679 = vmul.f32 1.0, %v678
        %v680 = vsel %vm669, %v679, 0.0
        %v681 = vadd.f32 %v680, 0.0
        %v682 = vadd.f32 %v679, 0.0
        %v683 = vsel %vm669, 3e+38, %v646
        %v684 = vsel %vm649, %v683, inf
        %v685 = vrot.slane %v684, 4
        %v686 = vmin.f32 %v684, %v685
        %v687 = vrot.slane %v686, 2
        %v688 = vmin.f32 %v686, %v687
        %v689 = vrot.slane %v688, 1
        %v690 = vmin.f32 %v688, %v689
        %vm691 = vcmp.eq.f32.partialorder %v683, %v690
        %v692 = vsel %vm691, %v648, 8
        %v693 = vsel %vm649, %v692, 2147483647
        %v694 = vrot.slane %v693, 4
        %vm695 = vcmp.lt.s32.totalorder %v693, %v694
        %v696 = vsel %vm695, %v693, %v694
        %v697 = vrot.slane %v696, 2
        %vm698 = vcmp.lt.s32.totalorder %v696, %v697
        %v699 = vsel %vm698, %v696, %v697
        %v700 = vrot.slane %v699, 1
        %vm701 = vcmp.lt.s32.totalorder %v699, %v700
        %v702 = vsel %vm701, %v699, %v700
        %vm703 = vcmp.eq.s32.totalorder %v648, %v702
        %v704 = vrsqrt.pop %v690
        %v705 = vmul.f32 %v690, %v704
        %vm706 = vcmp.eq.f32.partialorder %v690, inf
        %v707 = vsel %vm706, %v690, %v705
        %vm708 = vcmp.eq.f32.partialorder %v690, 0.0
        %v709 = vand.u32 %v690, 2147483648
        %v710 = vsel %vm708, %v709, %v707
        %v711 = vadd.f32 %v710, 1e-08
        %v712 = vrcp.pop %v711
        %v713 = vmul.f32 1.0, %v712
        %v714 = vsel %vm703, %v713, 0.0
        %v715 = vadd.f32 %v681, %v714
        %v716 = vadd.f32 %v682, %v713
        %v717 = vsel %vm703, 3e+38, %v683
        %v718 = vsel %vm649, %v717, inf
        %v719 = vrot.slane %v718, 4
        %v720 = vmin.f32 %v718, %v719
        %v721 = vrot.slane %v720, 2
        %v722 = vmin.f32 %v720, %v721
        %v723 = vrot.slane %v722, 1
        %v724 = vmin.f32 %v722, %v723
        %vm725 = vcmp.eq.f32.partialorder %v717, %v724
        %v726 = vsel %vm725, %v648, 8
        %v727 = vsel %vm649, %v726, 2147483647
        %v728 = vrot.slane %v727, 4
        %vm729 = vcmp.lt.s32.totalorder %v727, %v728
        %v730 = vsel %vm729, %v727, %v728
        %v731 = vrot.slane %v730, 2
        %vm732 = vcmp.lt.s32.totalorder %v730, %v731
        %v733 = vsel %vm732, %v730, %v731
        %v734 = vrot.slane %v733, 1
        %vm735 = vcmp.lt.s32.totalorder %v733, %v734
        %v736 = vsel %vm735, %v733, %v734
        %vm737 = vcmp.eq.s32.totalorder %v648, %v736
        %v738 = vrsqrt.pop %v724
        %v739 = vmul.f32 %v724, %v738
        %vm740 = vcmp.eq.f32.partialorder %v724, inf
        %v741 = vsel %vm740, %v724, %v739
        %vm742 = vcmp.eq.f32.partialorder %v724, 0.0
        %v743 = vand.u32 %v724, 2147483648
        %v744 = vsel %vm742, %v743, %v741
        %v745 = vadd.f32 %v744, 1e-08
        %v746 = vrcp.pop %v745
        %v747 = vmul.f32 1.0, %v746
        %v748 = vsel %vm737, %v747, 0.0
        %v749 = vadd.f32 %v715, %v748
        %v750 = vadd.f32 %v716, %v747
        %v751 = vpack.c.bf16 %v551, %v551
        %v752 = vpack.c.bf16 %v749, %v749
        %vm753 = vcmask 64512
        %v755 = vsel %vm753, %v751, 0
        %vm757 = vcmask 1043456
        %v759 = vsel %vm757, %v752, 0
        %761 = vmatprep.subr.bf16.mxu0 0
        %762 = vmatpush1.bf16.msra.mxu0 %v759
        %763 = vmatprep.subr.bf16.mxu0 0
        %764 = vmatpush1.bf16.msra.mxu0 0
        %765 = vmatprep.subr.bf16.mxu0 0
        %766 = vmatpush1.bf16.msra.mxu0 0
        %767 = vmatprep.subr.bf16.mxu0 0
        %768 = vmatpush1.bf16.msra.mxu0 0
        %769 = vmatprep.subr.bf16.mxu0 0
        %770 = vmatpush1.bf16.msra.mxu0 0
        %771 = vmatprep.subr.bf16.mxu0 0
        %772 = vmatpush1.bf16.msra.mxu0 0
        %773 = vmatprep.subr.bf16.mxu0 0
        %774 = vmatpush1.bf16.msra.mxu0 0
        %775 = vmatprep.subr.bf16.mxu0 0
        %776 = vmatpush1.bf16.msra.mxu0 0
        %777 = vmatprep.subr.bf16.mxu0 0
        %778 = vmatpush1.bf16.msra.mxu0 0
        %779 = vmatprep.subr.bf16.mxu0 0
        %780 = vmatpush1.bf16.msra.mxu0 0
        %781 = vmatprep.subr.bf16.mxu0 0
        %782 = vmatpush1.bf16.msra.mxu0 0
        %783 = vmatprep.subr.bf16.mxu0 0
        %784 = vmatpush1.bf16.msra.mxu0 0
        %785 = vmatprep.subr.bf16.mxu0 0
        %786 = vmatpush1.bf16.msra.mxu0 0
        %787 = vmatprep.subr.bf16.mxu0 0
        %788 = vmatpush1.bf16.msra.mxu0 0
        %789 = vmatprep.subr.bf16.mxu0 0
        %790 = vmatpush1.bf16.msra.mxu0 0
        %791 = vmatprep.subr.bf16.mxu0 0
        %792 = vmatpush1.bf16.msra.mxu0 0
        %793 = vmatprep.mubr.bf16.mxu0 0
        %794 = vmatmul.mubr.bf16.gmra.mrb[0].mxu0 %v755
        %v795 = vpop.f32.mrb[0].mxu0
        %v796 = vadd.f32 0.0, %v795
        %v797 = vpop.f32.mrb[0].mxu0
        %v798 = vpop.f32.mrb[0].mxu0
        %v799 = vpop.f32.mrb[0].mxu0
        %800 = vdwg.mxu0
        %v801 = vrcp.pop %v750
        %v802 = vmul.f32 %v796, %v801
        %v803 = vld [vmem:[#allocation10] sm:$0xf]
        %v804 = vld [vmem:[#allocation10 + $0x4] sm:$0xf]
        %v805 = vld [vmem:[#allocation10 + $0x8] sm:$0xf]
        %v806 = vld [vmem:[#allocation10 + $0xc] sm:$0xf]
        %v807 = vpack.c.bf16 %v802, %v802
        %v808 = vld [vmem:[#allocation11] sm:$0xf]
        %v809 = vld [vmem:[#allocation11 + $0x4] sm:$0xf]
        %v810 = vld [vmem:[#allocation11 + $0x8] sm:$0xf]
        %v811 = vld [vmem:[#allocation11 + $0xc] sm:$0xf]
        %v812 = vld [vmem:[%s478] sm:$0xf]
        %v813 = vpack.c.bf16 %v812, %v812
        %v818 = vunpack.c.l.b16 %v808
        %v819 = vunpack.c.l.b16 %v809
        %v820 = vunpack.c.l.b16 %v810
        %v821 = vunpack.c.l.b16 %v811
        %v822 = vpack.c.b16 %v819, %v818
        %v823 = vpack.c.b16 %v821, %v820
        %vm824 = vcmask 31744
        %v826 = vsel %vm824, %v822, 0
        %v829 = vsel %vm824, %v823, 0
        %vm831 = vcmask 1041408
        %v833 = vsel %vm831, %v813, 0
        %835 = vmatprep.subr.bf16.mxu0 0
        %836 = vmatpush1.bf16.msra.mxu0 %v833
        %837 = vmatprep.subr.bf16.mxu0 0
        %838 = vmatpush1.bf16.msra.mxu0 0
        %839 = vmatprep.subr.bf16.mxu0 0
        %840 = vmatpush1.bf16.msra.mxu0 0
        %841 = vmatprep.subr.bf16.mxu0 0
        %842 = vmatpush1.bf16.msra.mxu0 0
        %843 = vmatprep.subr.bf16.mxu0 0
        %844 = vmatpush1.bf16.msra.mxu0 0
        %845 = vmatprep.subr.bf16.mxu0 0
        %846 = vmatpush1.bf16.msra.mxu0 0
        %847 = vmatprep.subr.bf16.mxu0 0
        %848 = vmatpush1.bf16.msra.mxu0 0
        %849 = vmatprep.subr.bf16.mxu0 0
        %850 = vmatpush1.bf16.msra.mxu0 0
        %851 = vmatprep.subr.bf16.mxu0 0
        %852 = vmatpush1.bf16.msra.mxu0 0
        %853 = vmatprep.subr.bf16.mxu0 0
        %854 = vmatpush1.bf16.msra.mxu0 0
        %855 = vmatprep.subr.bf16.mxu0 0
        %856 = vmatpush1.bf16.msra.mxu0 0
        %857 = vmatprep.subr.bf16.mxu0 0
        %858 = vmatpush1.bf16.msra.mxu0 0
        %859 = vmatprep.subr.bf16.mxu0 0
        %860 = vmatpush1.bf16.msra.mxu0 0
        %861 = vmatprep.subr.bf16.mxu0 0
        %862 = vmatpush1.bf16.msra.mxu0 0
        %863 = vmatprep.subr.bf16.mxu0 0
        %864 = vmatpush1.bf16.msra.mxu0 0
        %865 = vmatprep.subr.bf16.mxu0 0
        %866 = vmatpush1.bf16.msra.mxu0 0
        %867 = vmatprep.mubr.bf16.mxu0 0
        %868 = vmatmul.mubr.bf16.gmra.mrb[0].mxu0 %v826
        %v869 = vpop.f32.mrb[0].mxu0
        %v870 = vadd.f32 0.0, %v869
        %v871 = vpop.f32.mrb[0].mxu0
        %v872 = vpop.f32.mrb[0].mxu0
        %v873 = vadd.f32 0.0, %v872
        %v874 = vpop.f32.mrb[0].mxu0
        %875 = vmatprep.mubr.bf16.mxu0 0
        %876 = vmatmul.mubr.bf16.gmra.mrb[0].mxu0 %v829
        %v877 = vpop.f32.mrb[0].mxu0
        %v878 = vadd.f32 0.0, %v877
        %v879 = vpop.f32.mrb[0].mxu0
        %v880 = vpop.f32.mrb[0].mxu0
        %v881 = vadd.f32 0.0, %v880
        %v882 = vpop.f32.mrb[0].mxu0
        %883 = vdwg.mxu0
        %v888 = vunpack.c.l.b16 %v803
        %v889 = vunpack.c.l.b16 %v804
        %v890 = vunpack.c.l.b16 %v805
        %v891 = vunpack.c.l.b16 %v806
        %v892 = vpack.c.b16 %v889, %v888
        %v893 = vpack.c.b16 %v891, %v890
        %vm894 = vcmask 48128
        %v896 = vsel %vm894, %v892, 0
        %v899 = vsel %vm894, %v893, 0
        %v902 = vsel %vm569, %v807, 0
        %904 = vmatprep.subr.bf16.mxu0 0
        %905 = vmatpush1.bf16.msra.mxu0 %v902
        %906 = vmatprep.subr.bf16.mxu0 0
        %907 = vmatpush1.bf16.msra.mxu0 0
        %908 = vmatprep.subr.bf16.mxu0 0
        %909 = vmatpush1.bf16.msra.mxu0 0
        %910 = vmatprep.subr.bf16.mxu0 0
        %911 = vmatpush1.bf16.msra.mxu0 0
        %912 = vmatprep.subr.bf16.mxu0 0
        %913 = vmatpush1.bf16.msra.mxu0 0
        %914 = vmatprep.subr.bf16.mxu0 0
        %915 = vmatpush1.bf16.msra.mxu0 0
        %916 = vmatprep.subr.bf16.mxu0 0
        %917 = vmatpush1.bf16.msra.mxu0 0
        %918 = vmatprep.subr.bf16.mxu0 0
        %919 = vmatpush1.bf16.msra.mxu0 0
        %920 = vmatprep.subr.bf16.mxu0 0
        %921 = vmatpush1.bf16.msra.mxu0 0
        %922 = vmatprep.subr.bf16.mxu0 0
        %923 = vmatpush1.bf16.msra.mxu0 0
        %924 = vmatprep.subr.bf16.mxu0 0
        %925 = vmatpush1.bf16.msra.mxu0 0
        %926 = vmatprep.subr.bf16.mxu0 0
        %927 = vmatpush1.bf16.msra.mxu0 0
        %928 = vmatprep.subr.bf16.mxu0 0
        %929 = vmatpush1.bf16.msra.mxu0 0
        %930 = vmatprep.subr.bf16.mxu0 0
        %931 = vmatpush1.bf16.msra.mxu0 0
        %932 = vmatprep.subr.bf16.mxu0 0
        %933 = vmatpush1.bf16.msra.mxu0 0
        %934 = vmatprep.subr.bf16.mxu0 0
        %935 = vmatpush1.bf16.msra.mxu0 0
        %936 = vmatprep.mubr.bf16.mxu0 0
        %937 = vmatmul.mubr.bf16.gmra.mrb[0].mxu0 %v896
        %v938 = vpop.f32.mrb[0].mxu0
        %v939 = vadd.f32 %v870, %v938
        %v940 = vpop.f32.mrb[0].mxu0
        %v941 = vpop.f32.mrb[0].mxu0
        %v942 = vadd.f32 %v873, %v941
        %v943 = vpop.f32.mrb[0].mxu0
        %944 = vmatprep.mubr.bf16.mxu0 0
        %945 = vmatmul.mubr.bf16.gmra.mrb[0].mxu0 %v899
        %v946 = vpop.f32.mrb[0].mxu0
        %v947 = vadd.f32 %v878, %v946
        %v948 = vpop.f32.mrb[0].mxu0
        %v949 = vpop.f32.mrb[0].mxu0
        %v950 = vadd.f32 %v881, %v949
        %v951 = vpop.f32.mrb[0].mxu0
        %952 = vdwg.mxu0
        %v953 = vld [vmem:[#allocation13] sm:$0xff]
        %v954 = vld [vmem:[#allocation13 + $0x8] sm:$0xff]
        %v955 = vld [vmem:[#allocation13 + $0x10] sm:$0xff]
        %v956 = vld [vmem:[#allocation13 + $0x18] sm:$0xff]
        %958 = vset.pattern.permute.xlu0 0
        %959 = vperm.xlu0 %958, %v953
        %v960 = vpop.permute.xlu0 %959
        %963 = vset.pattern.permute.xlu0 0
        %964 = vperm.xlu0 %963, %v954
        %v965 = vpop.permute.xlu0 %964
        %968 = vset.pattern.permute.xlu0 0
        %969 = vperm.xlu0 %968, %v955
        %v970 = vpop.permute.xlu0 %969
        %973 = vset.pattern.permute.xlu0 0
        %974 = vperm.xlu0 %973, %v956
        %v975 = vpop.permute.xlu0 %974
        %v977 = vadd.f32 %v939, %v960
        %v978 = vadd.f32 %v942, %v965
        %v979 = vadd.f32 %v947, %v970
        %v980 = vadd.f32 %v950, %v975
        %v981 = vmax.f32 %v977, 0.0
        %v982 = vmax.f32 %v978, 0.0
        %v983 = vmax.f32 %v979, 0.0
        %v984 = vmax.f32 %v980, 0.0
        %v985 = vld [vmem:[#allocation14] sm:$0xf]
        %v986 = vld [vmem:[#allocation14 + $0x4] sm:$0xf]
        %v987 = vpack.c.bf16 %v982, %v981
        %v988 = vpack.c.bf16 %v984, %v983
        %v989 = vld [vmem:[#allocation16] sm:$0xff]
        %v990 = vld [vmem:[#allocation16 + $0x8] sm:$0xff]
        %992 = vset.pattern.permute.xlu0 0
        %993 = vperm.xlu0 %992, %v989
        %v994 = vpop.permute.xlu0 %993
        %997 = vset.pattern.permute.xlu0 0
        %998 = vperm.xlu0 %997, %v990
        %v999 = vpop.permute.xlu0 %998
        %v1003 = vunpack.c.l.b16 %v985
        %v1004 = vunpack.c.l.b16 %v986
        %v1005 = vpack.c.b16 %v1004, %v1003
        %vm1006 = vcmask 261120
        %v1008 = vsel %vm1006, %v1005, 0
        %1010 = vmatprep.subr.bf16.mxu0 0
        %1011 = vmatpush1.bf16.msra.mxu0 %v987
        %1012 = vmatprep.subr.bf16.mxu0 0
        %1013 = vmatpush1.bf16.msra.mxu0 %v988
        %1014 = vmatprep.subr.bf16.mxu0 0
        %1015 = vmatpush1.bf16.msra.mxu0 0
        %1016 = vmatprep.subr.bf16.mxu0 0
        %1017 = vmatpush1.bf16.msra.mxu0 0
        %1018 = vmatprep.subr.bf16.mxu0 0
        %1019 = vmatpush1.bf16.msra.mxu0 0
        %1020 = vmatprep.subr.bf16.mxu0 0
        %1021 = vmatpush1.bf16.msra.mxu0 0
        %1022 = vmatprep.subr.bf16.mxu0 0
        %1023 = vmatpush1.bf16.msra.mxu0 0
        %1024 = vmatprep.subr.bf16.mxu0 0
        %1025 = vmatpush1.bf16.msra.mxu0 0
        %1026 = vmatprep.subr.bf16.mxu0 0
        %1027 = vmatpush1.bf16.msra.mxu0 0
        %1028 = vmatprep.subr.bf16.mxu0 0
        %1029 = vmatpush1.bf16.msra.mxu0 0
        %1030 = vmatprep.subr.bf16.mxu0 0
        %1031 = vmatpush1.bf16.msra.mxu0 0
        %1032 = vmatprep.subr.bf16.mxu0 0
        %1033 = vmatpush1.bf16.msra.mxu0 0
        %1034 = vmatprep.subr.bf16.mxu0 0
        %1035 = vmatpush1.bf16.msra.mxu0 0
        %1036 = vmatprep.subr.bf16.mxu0 0
        %1037 = vmatpush1.bf16.msra.mxu0 0
        %1038 = vmatprep.subr.bf16.mxu0 0
        %1039 = vmatpush1.bf16.msra.mxu0 0
        %1040 = vmatprep.subr.bf16.mxu0 0
        %1041 = vmatpush1.bf16.msra.mxu0 0
        %1042 = vmatprep.mubr.bf16.mxu0 0
        %1043 = vmatmul.mubr.bf16.gmra.mrb[0].mxu0 %v1008
        %v1044 = vpop.f32.mrb[0].mxu0
        %v1045 = vadd.f32 %v994, %v1044
        %v1046 = vpop.f32.mrb[0].mxu0
        %v1047 = vpop.f32.mrb[0].mxu0
        %v1048 = vadd.f32 %v999, %v1047
        %v1049 = vpop.f32.mrb[0].mxu0
        %1050 = vdwg.mxu0
        %v1051 = vmax.f32 %v1045, 0.0
        %v1052 = vmax.f32 %v1048, 0.0
        %1053 = vst.msk [vmem:[%s547] sm:$0xff] %vm649, %v1051
        %1054 = vst.msk [vmem:[%s547 + $0x8] sm:$0xff] %vm649, %v1052
        %s1055 = sand.u32 %s269, 1
        %s1056 = scalar_lea.sflag [#allocation4], %s1055
        %s1057 = sand.u32 %s269, 1
        %s1058 = smul.addr %s1057, 16
        %s1059 = scalar_lea.vmem [#allocation17], %s1058
        // Predicated region
        $region93: #{feature_propagator_forward.1} parent=55 // pred_check
          %p1060 = pneg %p279
        $region94: #{feature_propagator_forward.1} parent=55 // pred_check_branch
          %1062 = sbr.rel (%p1060) target = $region96
        $region95: #{feature_propagator_forward.1} parent=55 // pred_region
          %s1064 = ssub.s32 256, 256
          %1065 = vsyncadd %s1056, %s1064
          %s1066 = smul.addr %s38, 2
          %s1067 = sadd.s32 %s39, %s1066
          %s1068 = smul.addr %s1067, 128
          %s1069 = scalar_lea.hbm %s9, %s1068
          %s1070 = sshll.u32 %s1059, 4
          %s1071 = int_to_ptr.vmem [resolvable:$true] %s1070
          %1076 = dma.vmem_to_hbm [thread:$0]  %s1071, 256, %s1069, %s1056, 128, 128, 8
        $region96: #{feature_propagator_forward.1} parent=55 // pred_fallthru
          _
      $region56: #{feature_propagator_forward.1} parent=5 // pred_fallthru
        _
      %p1077 = scmp.le.s32.totalorder 2, %s29
      // Predicated region
      $region97: #{feature_propagator_forward.1} parent=5 // pred_check
        %p1078 = pneg %p1077
      $region98: #{feature_propagator_forward.1} parent=5 // pred_check_branch
        %1080 = sbr.rel (%p1078) target = $region100
      $region99: #{feature_propagator_forward.1} parent=5 // pred_region
        %s1081 = ssub.s32 %s29, 2
        // Predicated region
        $region101: #{feature_propagator_forward.1} parent=99 // pred_check
          %p1082 = pneg %p285
        $region102: #{feature_propagator_forward.1} parent=99 // pred_check_branch
          %1084 = sbr.rel (%p1082) target = $region104
        $region103: #{feature_propagator_forward.1} parent=99 // pred_region
          %s1085 = sand.u32 %s270, 1
          %s1086 = scalar_lea.sflag [#allocation4], %s1085
          %s1087 = sand.u32 %s270, 1
          %s1088 = smul.addr %s1087, 16
          %s1089 = scalar_lea.vmem [#allocation17], %s1088
          %1090 = dma.done %s1086, 256
        $region104: #{feature_propagator_forward.1} parent=99 // pred_fallthru
          _
      $region100: #{feature_propagator_forward.1} parent=5 // pred_fallthru
        _
    $region6: #{feature_propagator_forward.1} parent=1 // loop_footer
      %s33 = sadd.s32 1, %s29
    $region7: #{feature_propagator_forward.1} parent=1 // loop_footer_branch
      %28 = sbr.rel target = $region3
    $region8: #{feature_propagator_forward.1} parent=1 // loop_exit
      _
    %1091 = vsyncpa [#allocation3], 1
    %s1092 = scalar_lea.sflag [#allocation3], 1
    %1093 = vsyncpa %s1092, 1
    %1094 = vsyncpa [#allocation6], 1
    %s1095 = scalar_lea.sflag [#allocation6], 1
    %1096 = vsyncpa %s1095, 1
    %1097 = vsyncpa [#allocation9], 1
    %s1098 = scalar_lea.sflag [#allocation9], 1
    %1099 = vsyncpa %s1098, 1
    %1100 = vsyncpa [#allocation12], 1
    %1101 = vsyncpa [#allocation15], 1
    %1102 = vsyncpa [#allocation4], 1
    %s1103 = scalar_lea.sflag [#allocation4], 1
    %1104 = vsyncpa %s1103, 1

</llo_original>
